<compile_context>
chip_gen: v7x
topology: tpu7x:2x2x1
jax: 0.10.0
libtpu: 0.0.40
codegen_flags: <defaults>
</compile_context>

<pallas_src>
import jax
import jax.numpy as jnp
from jax import lax
from jax.experimental import pallas as pl
from jax.experimental.pallas import tpu as pltpu


def _round_up(x, m):
    return ((x + m - 1) // m) * m


def _gate_kernel(x_ref, w_ref, b_ref, o_ref):
    # x_ref: (TM, K)   w_ref: (Dp, K)   b_ref: (1, Dp)   o_ref: (TM, Dp)
    # Contract x's K axis against the weight's K axis (PyTorch (D, 2D) layout,
    # no transpose needed) -> (TM, Dp) f32 accumulator on the MXU.
    acc = lax.dot_general(
        x_ref[...],
        w_ref[...],
        dimension_numbers=(((1,), (1,)), ((), ())),
        preferred_element_type=jnp.float32,
    )
    acc = acc + b_ref[...].astype(jnp.float32)   # broadcast bias over rows
    o_ref[...] = jax.nn.sigmoid(acc).astype(o_ref.dtype)


def gate_sublayer(x, weight, bias, *, block_m=512):
    """sigmoid(x @ weight.T + bias).

    x: (B, T, 2*D), weight: (D, 2*D) [PyTorch nn.Linear layout], bias: (D,)
    returns (B, T, D).
    """
    B, T, K = x.shape
    D = weight.shape[0]
    assert weight.shape == (D, K) and K == 2 * D and bias.shape == (D,)

    M = B * T
    out_dtype = x.dtype

    # Lane-dense output slab: pad the output/N dim to a multiple of 128.
    Dp = _round_up(D, 128)
    # Row tile: amortize per-grid-step overhead while fitting a 64 MiB
    # (v7x-sized) VMEM budget with double buffering; clamp for tiny inputs.
    TM = min(block_m, _round_up(M, 8))
    Mp = _round_up(M, TM)

    x2d = x.reshape(M, K)
    if Mp != M:
        x2d = jnp.pad(x2d, ((0, Mp - M), (0, 0)))
    w = weight if Dp == D else jnp.pad(weight, ((0, Dp - D), (0, 0)))
    b = (bias if Dp == D else jnp.pad(bias, (0, Dp - D))).reshape(1, Dp)

    cost = pl.CostEstimate(
        flops=2 * M * K * D,
        transcendentals=M * D,
        bytes_accessed=(
            x2d.size * x2d.dtype.itemsize
            + w.size * w.dtype.itemsize
            + b.size * b.dtype.itemsize
            + Mp * Dp * jnp.dtype(out_dtype).itemsize
        ),
    )

    out2d = pl.pallas_call(
        _gate_kernel,
        out_shape=jax.ShapeDtypeStruct((Mp, Dp), out_dtype),
        grid_spec=pltpu.PrefetchScalarGridSpec(
            num_scalar_prefetch=0,
            grid=(Mp // TM,),
            in_specs=[
                # x: tiled over rows, pipelined across the grid.
                pl.BlockSpec((TM, K), lambda i: (i, 0)),
                # weight & bias: constant block -> stay VMEM-resident.
                pl.BlockSpec((Dp, K), lambda i: (0, 0)),
                pl.BlockSpec((1, Dp), lambda i: (0, 0)),
            ],
            out_specs=pl.BlockSpec((TM, Dp), lambda i: (i, 0)),
        ),
        compiler_params=pltpu.CompilerParams(
            dimension_semantics=("parallel",),
            vmem_limit_bytes=64 << 20,
        ),
        cost_estimate=cost,
    )(x2d, w, b)

    return out2d[:M, :D].reshape(B, T, D)


def gate_sublayer_ref(x, weight, bias):
    return jax.nn.sigmoid(jnp.einsum("btk,dk->btd", x, weight) + bias)


if __name__ == "__main__":
    B, T, D = 2, 8, 32

    key = jax.random.PRNGKey(0)
    kx, kw, kb = jax.random.split(key, 3)

    # Deterministic parameter init matching nn.Linear(2*D, D) shapes:
    # weight (D, 2*D), bias (D,), U(-1/sqrt(2D), 1/sqrt(2D))
    bound = 1.0 / jnp.sqrt(2.0 * D)
    weight = jax.random.uniform(kw, (D, 2 * D), jnp.float32, -bound, bound)
    bias = jax.random.uniform(kb, (D,), jnp.float32, -bound, bound)

    x = jax.random.normal(kx, (B, T, 2 * D), jnp.float32)

    out = gate_sublayer(x, weight, bias)
    out = jax.block_until_ready(out)

    ref = gate_sublayer_ref(x, weight, bias)
    assert out.shape == (B, T, D)
    assert jnp.allclose(out, ref, atol=1e-5, rtol=1e-5)

    print("KERNEL_OK")
</pallas_src>

<mosaic_0001>
module attributes {stable_mosaic.version = 11 : i64} {
  func.func @_gate_kernel(%arg0: i32, %arg1: memref<16x64xf32, #tpu.memory_space<vmem>>, %arg2: memref<128x64xf32, #tpu.memory_space<vmem>>, %arg3: memref<1x128xf32, #tpu.memory_space<vmem>>, %arg4: memref<16x128xf32, #tpu.memory_space<vmem>>) attributes {dimension_semantics = [#tpu.dimension_semantics<parallel>], iteration_bounds = array<i64: 1>, scalar_prefetch = 0 : i64, scratch_operands = 0 : i64, tpu.core_type = #tpu.core_type<tc>, window_params = [{transform_indices = @transform_0, window_bounds = array<i64: 16, 64>}, {pipeline_mode = #tpu.pipeline_mode<synchronous>, transform_indices = @transform_1, window_bounds = array<i64: 128, 64>}, {pipeline_mode = #tpu.pipeline_mode<synchronous>, transform_indices = @transform_2, window_bounds = array<i64: 1, 128>}, {transform_indices = @transform_3, window_bounds = array<i64: 16, 128>}]} {
    %c0 = arith.constant 0 : index
    %c0_0 = arith.constant 0 : index
    %0 = vector.load %arg1[%c0, %c0_0] : memref<16x64xf32, #tpu.memory_space<vmem>>, vector<16x64xf32>
    %c0_1 = arith.constant 0 : index
    %c0_2 = arith.constant 0 : index
    %1 = vector.load %arg2[%c0_1, %c0_2] : memref<128x64xf32, #tpu.memory_space<vmem>>, vector<128x64xf32>
    %cst = arith.constant dense<0.000000e+00> : vector<16x128xf32>
    %2 = tpu.matmul %0, %1, %cst {dimension_numbers = #tpu.dot_dimension_numbers<[1], [1], [0], [0], [0, 0, 1, 0], [], []>} : vector<16x64xf32>, vector<128x64xf32>, vector<16x128xf32> -> vector<16x128xf32>
    %c0_3 = arith.constant 0 : index
    %c0_4 = arith.constant 0 : index
    %3 = vector.load %arg3[%c0_3, %c0_4] : memref<1x128xf32, #tpu.memory_space<vmem>>, vector<1x128xf32>
    %4 = vector.broadcast %3 : vector<1x128xf32> to vector<16x128xf32>
    %5 = arith.addf %2, %4 : vector<16x128xf32>
    %6 = arith.negf %5 : vector<16x128xf32>
    %7 = math.exp %6 : vector<16x128xf32>
    %cst_5 = arith.constant 1.000000e+00 : f32
    %8 = vector.broadcast %cst_5 : f32 to vector<16x128xf32>
    %9 = arith.addf %8, %7 : vector<16x128xf32>
    %10 = arith.divf %8, %9 : vector<16x128xf32>
    %c0_6 = arith.constant 0 : index
    %c0_7 = arith.constant 0 : index
    %11 = vector.load %arg4[%c0_6, %c0_7] : memref<16x128xf32, #tpu.memory_space<vmem>>, vector<16x128xf32>
    tpu.vector_store %arg4[%c0_6, %c0_7], %10 {strides = array<i32>} : memref<16x128xf32, #tpu.memory_space<vmem>>, vector<16x128xf32>,
    return
  }
  func.func @transform_0(%arg0: i32) -> (i32, i32) {
    %c0_i32 = arith.constant 0 : i32
    %c0_i32_0 = arith.constant 0 : i32
    return %arg0, %c0_i32 : i32, i32
  }
  func.func @transform_1(%arg0: i32) -> (i32, i32) {
    %c0_i32 = arith.constant 0 : i32
    %c0_i32_0 = arith.constant 0 : i32
    %c0_i32_1 = arith.constant 0 : i32
    return %c0_i32, %c0_i32_0 : i32, i32
  }
  func.func @transform_2(%arg0: i32) -> (i32, i32) {
    %c0_i32 = arith.constant 0 : i32
    %c0_i32_0 = arith.constant 0 : i32
    %c0_i32_1 = arith.constant 0 : i32
    return %c0_i32, %c0_i32_0 : i32, i32
  }
  func.func @transform_3(%arg0: i32) -> (i32, i32) {
    %c0_i32 = arith.constant 0 : i32
    %c0_i32_0 = arith.constant 0 : i32
    return %arg0, %c0_i32 : i32, i32
  }
}

</mosaic_0001>

<llo_original>
// kernel: tpu_custom_call.1
$region0: #{tpu_custom_call.1}
  #allocation0 [shape = 'u32[]', space=smem, size = 0x4, offset = 0x4, fixed_abs, tag = 'smem constant byte address 0x4 - core index']
  #allocation1 [shape = 'u32[144,128]{1,0:T(1,128)}', space=vmem, size = 0x12000, scoped, tag = 'internal scratch']
  %s0 = inlined_call_operand.hbm [shape: f32[16,64], index: 0, kind: input, shape index: {}]
  %s1 = inlined_call_operand.hbm [shape: f32[128,64], index: 1, kind: input, shape index: {}]
  %s2 = inlined_call_operand.hbm [shape: f32[1,128], index: 2, kind: input, shape index: {}]
  %s3 = inlined_call_operand.hbm [shape: f32[16,128], index: 3, kind: output, shape index: {}]
  %s4 = sld [smem:[#allocation0]]
  $region34: #{tpu_custom_call.1} parent=0
    _
  %s6 = ssub.s32 1, %s4
  %s7 = scalar_select 0, %s6, %s4
  $region1: #{tpu_custom_call.1} parent=0
    #allocation2 [shape = 'u8[8192]{0}', space=vmem, size = 0x2000, scoped, tag = 'input window, operand 0, single buffered']
    #allocation3 [shape = 's32[1]{0}', space=sflag, size = 0x4, scoped, tag = 'scoped memory for tpu_custom_call.1']
    #allocation4 [shape = 's32[1]{0}', space=sflag, size = 0x4, scoped, tag = 'scoped memory for tpu_custom_call.1']
    #allocation5 [shape = 'u8[65536]{0}', space=vmem, size = 0x10000, scoped, tag = 'input window, operand 1, single buffered']
    #allocation6 [shape = 's32[1]{0}', space=sflag, size = 0x4, scoped, tag = 'scoped memory for tpu_custom_call.1']
    #allocation7 [shape = 'u8[512]{0}', space=vmem, size = 0x400, scoped, tag = 'input window, operand 2, single buffered']
    #allocation8 [shape = 'u8[8192]{0}', space=vmem, size = 0x2000, scoped, tag = 'output window, operand 0, single buffered']
    %8 = vsyncpa [#allocation3], 0
    %9 = vsyncpa [#allocation6], 0
    %10 = vsyncpa [#allocation4], 0
    // Predicated region
    $region2: #{tpu_custom_call.1} parent=1 // pred_check
      _
    $region3: #{tpu_custom_call.1} parent=1 // pred_check_branch
      %12 = sbr.rel (0) target = $region5
    $region4: #{tpu_custom_call.1} parent=1 // pred_region
      %s14 = ssub.s32 256, 256
      %15 = vsyncadd [#allocation3], %s14
      %s16 = sshll.u32 [#allocation2], 4
      %s17 = int_to_ptr.vmem [resolvable:$true] %s16
      %22 = dma.hbm_to_vmem [thread:$0]  %s0, 256, %s17, [#allocation3], 128, 128, 8
    $region5: #{tpu_custom_call.1} parent=1 // pred_fallthru
      _
    // Predicated region
    $region6: #{tpu_custom_call.1} parent=1 // pred_check
      _
    $region7: #{tpu_custom_call.1} parent=1 // pred_check_branch
      %24 = sbr.rel (0) target = $region9
    $region8: #{tpu_custom_call.1} parent=1 // pred_region
      %s26 = ssub.s32 2048, 2048
      %27 = vsyncadd [#allocation6], %s26
      %s28 = sshll.u32 [#allocation5], 4
      %s29 = int_to_ptr.vmem [resolvable:$true] %s28
      %34 = dma.hbm_to_vmem [thread:$0]  %s1, 2048, %s29, [#allocation6], 128, 128, 8
    $region9: #{tpu_custom_call.1} parent=1 // pred_fallthru
      _
    // Predicated region
    $region10: #{tpu_custom_call.1} parent=1 // pred_check
      _
    $region11: #{tpu_custom_call.1} parent=1 // pred_check_branch
      %36 = sbr.rel (0) target = $region13
    $region12: #{tpu_custom_call.1} parent=1 // pred_region
      %s38 = ssub.s32 16, 16
      %39 = vsyncadd [#allocation6], %s38
      %s41 = sshll.u32 [#allocation7], 4
      %s42 = int_to_ptr.vmem [resolvable:$true] %s41
      %44 = dma.hbm_to_vmem [thread:$0]  %s2, 16, %s42, [#allocation6]
    $region13: #{tpu_custom_call.1} parent=1 // pred_fallthru
      _
    // Predicated region
    $region14: #{tpu_custom_call.1} parent=1 // pred_check
      _
    $region15: #{tpu_custom_call.1} parent=1 // pred_check_branch
      %46 = sbr.rel (0) target = $region17
    $region16: #{tpu_custom_call.1} parent=1 // pred_region
      %47 = dma.done [#allocation3], 256
    $region17: #{tpu_custom_call.1} parent=1 // pred_fallthru
      _
    // Predicated region
    $region18: #{tpu_custom_call.1} parent=1 // pred_check
      _
    $region19: #{tpu_custom_call.1} parent=1 // pred_check_branch
      %49 = sbr.rel (0) target = $region21
    $region20: #{tpu_custom_call.1} parent=1 // pred_region
      %50 = dma.done [#allocation6], 2048
    $region21: #{tpu_custom_call.1} parent=1 // pred_fallthru
      _
    // Predicated region
    $region22: #{tpu_custom_call.1} parent=1 // pred_check
      _
    $region23: #{tpu_custom_call.1} parent=1 // pred_check_branch
      %52 = sbr.rel (0) target = $region25
    $region24: #{tpu_custom_call.1} parent=1 // pred_region
      %53 = dma.done [#allocation6], 16
    $region25: #{tpu_custom_call.1} parent=1 // pred_fallthru
      _
    %v54 = vld [vmem:[#allocation2] sm:$0xff]
    %v55 = vld [vmem:[#allocation2 + $0x8] sm:$0xff]
    %v56 = vld [vmem:[#allocation5] sm:$0xff]
    %v57 = vld [vmem:[#allocation5 + $0x8] sm:$0xff]
    %v58 = vld [vmem:[#allocation5 + $0x10] sm:$0xff]
    %v59 = vld [vmem:[#allocation5 + $0x18] sm:$0xff]
    %v60 = vld [vmem:[#allocation5 + $0x20] sm:$0xff]
    %v61 = vld [vmem:[#allocation5 + $0x28] sm:$0xff]
    %v62 = vld [vmem:[#allocation5 + $0x30] sm:$0xff]
    %v63 = vld [vmem:[#allocation5 + $0x38] sm:$0xff]
    %v64 = vld [vmem:[#allocation5 + $0x40] sm:$0xff]
    %v65 = vld [vmem:[#allocation5 + $0x48] sm:$0xff]
    %v66 = vld [vmem:[#allocation5 + $0x50] sm:$0xff]
    %v67 = vld [vmem:[#allocation5 + $0x58] sm:$0xff]
    %v68 = vld [vmem:[#allocation5 + $0x60] sm:$0xff]
    %v69 = vld [vmem:[#allocation5 + $0x68] sm:$0xff]
    %v70 = vld [vmem:[#allocation5 + $0x70] sm:$0xff]
    %v71 = vld [vmem:[#allocation5 + $0x78] sm:$0xff]
    %v72 = vld [vmem:[#allocation7] sm:$0x1]
    %v74 = vlaneseq
    %v75 = vshrl.u32 %v74, 7
    %v76 = vsub.s32 0, %v75
    %v77 = vrot.slane %v72, %v76
    %vm79 = vcmask 523264
    %v81 = vsel %vm79, %v54, 0
    %v84 = vsel %vm79, %v55, 0
    %v87 = vsel %vm79, %v56, 0
    %v90 = vsel %vm79, %v57, 0
    %v93 = vsel %vm79, %v58, 0
    %v96 = vsel %vm79, %v59, 0
    %v99 = vsel %vm79, %v60, 0
    %v102 = vsel %vm79, %v61, 0
    %v105 = vsel %vm79, %v62, 0
    %v108 = vsel %vm79, %v63, 0
    %v111 = vsel %vm79, %v64, 0
    %v114 = vsel %vm79, %v65, 0
    %v117 = vsel %vm79, %v66, 0
    %v120 = vsel %vm79, %v67, 0
    %v123 = vsel %vm79, %v68, 0
    %v126 = vsel %vm79, %v69, 0
    %v129 = vsel %vm79, %v70, 0
    %v132 = vsel %vm79, %v71, 0
    %134 = vmatprep.subr.mxu0 0.0
    %135 = vmatpush1.xpose.msra.mxu0 %v87
    %136 = vmatprep.subr.mxu0 0.0
    %137 = vmatpush1.xpose.msra.mxu0 %v90
    %138 = vmatprep.subr.mxu0 0.0
    %139 = vmatpush1.xpose.msra.mxu0 %v93
    %140 = vmatprep.subr.mxu0 0.0
    %141 = vmatpush1.xpose.msra.mxu0 %v96
    %142 = vmatprep.subr.mxu0 0.0
    %143 = vmatpush1.xpose.msra.mxu0 %v99
    %144 = vmatprep.subr.mxu0 0.0
    %145 = vmatpush1.xpose.msra.mxu0 %v102
    %146 = vmatprep.subr.mxu0 0.0
    %147 = vmatpush1.xpose.msra.mxu0 %v105
    %148 = vmatprep.subr.mxu0 0.0
    %149 = vmatpush1.xpose.msra.mxu0 %v108
    %150 = vmatprep.subr.mxu0 0.0
    %151 = vmatpush1.xpose.msra.mxu0 %v111
    %152 = vmatprep.subr.mxu0 0.0
    %153 = vmatpush1.xpose.msra.mxu0 %v114
    %154 = vmatprep.subr.mxu0 0.0
    %155 = vmatpush1.xpose.msra.mxu0 %v117
    %156 = vmatprep.subr.mxu0 0.0
    %157 = vmatpush1.xpose.msra.mxu0 %v120
    %158 = vmatprep.subr.mxu0 0.0
    %159 = vmatpush1.xpose.msra.mxu0 %v123
    %160 = vmatprep.subr.mxu0 0.0
    %161 = vmatpush1.xpose.msra.mxu0 %v126
    %162 = vmatprep.subr.mxu0 0.0
    %163 = vmatpush1.xpose.msra.mxu0 %v129
    %164 = vmatprep.subr.mxu0 0.0
    %165 = vmatpush1.xpose.msra.mxu0 %v132
    %166 = vmatprep.subr.mxu0 0.0
    %167 = vmatpush1.xpose.msra.mxu0 0.0
    %168 = vmatprep.subr.mxu0 0.0
    %169 = vmatpush1.xpose.msra.mxu0 0.0
    %170 = vmatprep.subr.mxu0 0.0
    %171 = vmatpush1.xpose.msra.mxu0 0.0
    %172 = vmatprep.subr.mxu0 0.0
    %173 = vmatpush1.xpose.msra.mxu0 0.0
    %174 = vmatprep.subr.mxu0 0.0
    %175 = vmatpush1.xpose.msra.mxu0 0.0
    %176 = vmatprep.subr.mxu0 0.0
    %177 = vmatpush1.xpose.msra.mxu0 0.0
    %178 = vmatprep.subr.mxu0 0.0
    %179 = vmatpush1.xpose.msra.mxu0 0.0
    %180 = vmatprep.subr.mxu0 0.0
    %181 = vmatpush1.xpose.msra.mxu0 0.0
    %182 = vmatprep.subr.mxu0 0.0
    %183 = vmatpush1.xpose.msra.mxu0 0.0
    %184 = vmatprep.subr.mxu0 0.0
    %185 = vmatpush1.xpose.msra.mxu0 0.0
    %186 = vmatprep.subr.mxu0 0.0
    %187 = vmatpush1.xpose.msra.mxu0 0.0
    %188 = vmatprep.subr.mxu0 0.0
    %189 = vmatpush1.xpose.msra.mxu0 0.0
    %190 = vmatprep.subr.mxu0 0.0
    %191 = vmatpush1.xpose.msra.mxu0 0.0
    %192 = vmatprep.subr.mxu0 0.0
    %193 = vmatpush1.xpose.msra.mxu0 0.0
    %194 = vmatprep.subr.mxu0 0.0
    %195 = vmatpush1.xpose.msra.mxu0 0.0
    %196 = vmatprep.subr.mxu0 0.0
    %197 = vmatpush1.xpose.msra.mxu0 0.0
    %198 = vmatprep.mubr.f32.mxu0 0.0
    %199 = vmatmul.mubr.f32.gmra.mrb[0].mxu0 %v81
    %v200 = vpop.f32.mrb[0].mxu0
    %v201 = vadd.f32 %v77, %v200
    %v202 = vpop.f32.mrb[0].mxu0
    %203 = vmatprep.mubr.f32.mxu0 0.0
    %204 = vmatmul.mubr.f32.gmra.mrb[0].mxu0 %v84
    %v205 = vpop.f32.mrb[0].mxu0
    %v206 = vadd.f32 %v77, %v205
    %v207 = vpop.f32.mrb[0].mxu0
    %208 = vdwg.mxu0
    %v209 = vxor.u32 %v201, 2147483648
    %v210 = vxor.u32 %v206, 2147483648
    %v211 = vmul.f32 %v209, 1.442695
    %v212 = vpow.pop %v211
    %v213 = vmul.f32 %v210, 1.442695
    %v214 = vpow.pop %v213
    %v215 = vadd.f32 %v212, 1.0
    %v216 = vadd.f32 %v214, 1.0
    %v217 = vrcp.pop %v215
    %v218 = vmul.f32 1.0, %v217
    %v219 = vrcp.pop %v216
    %v220 = vmul.f32 1.0, %v219
    %221 = vst [vmem:[#allocation8] sm:$0xff] %v218
    %222 = vst [vmem:[#allocation8 + $0x8] sm:$0xff] %v220
    // Predicated region
    $region26: #{tpu_custom_call.1} parent=1 // pred_check
      _
    $region27: #{tpu_custom_call.1} parent=1 // pred_check_branch
      %224 = sbr.rel (0) target = $region29
    $region28: #{tpu_custom_call.1} parent=1 // pred_region
      %s226 = ssub.s32 256, 256
      %227 = vsyncadd [#allocation4], %s226
      %s228 = sshll.u32 [#allocation8], 4
      %s229 = int_to_ptr.vmem [resolvable:$true] %s228
      %234 = dma.vmem_to_hbm [thread:$0]  %s229, 256, %s3, [#allocation4], 128, 128, 8
    $region29: #{tpu_custom_call.1} parent=1 // pred_fallthru
      _
    // Predicated region
    $region30: #{tpu_custom_call.1} parent=1 // pred_check
      _
    $region31: #{tpu_custom_call.1} parent=1 // pred_check_branch
      %236 = sbr.rel (0) target = $region33
    $region32: #{tpu_custom_call.1} parent=1 // pred_region
      %237 = dma.done [#allocation4], 256
    $region33: #{tpu_custom_call.1} parent=1 // pred_fallthru
      _
    %238 = vsyncpa [#allocation3], 1
    %239 = vsyncpa [#allocation6], 1
    %240 = vsyncpa [#allocation4], 1

</llo_original>
